<compile_context>
chip_gen: v5e
topology: v5e:2x2
jax: 0.10.0
libtpu: 0.0.40
codegen_flags: <defaults>
</compile_context>

<pallas_src>
import jax
import jax.numpy as jnp
from jax.experimental import pallas as pl
from jax.experimental.pallas import tpu as pltpu


def _round_up(v, m):
    return ((v + m - 1) // m) * m


def _ppo_actor_kernel(x_ref, w1_ref, b1_ref, w2_ref, b2_ref, w3p_ref, b3p_ref,
                      std2_ref, eps2_ref, out_ref):
    """One batch tile: 3-layer ReLU MLP + Gaussian sampling head, packed output.

    The last layer is pre-duplicated to (W, 2A)/(1, 2A) so the third matmul
    directly emits [mean | mean]; adding std2 * eps2 (std2 = [std | std],
    eps2 = [0 | eps]) turns the second half into the sampled action.  One
    full-tile store, no in-kernel concatenate.
    """
    cdt = w1_ref.dtype                         # MXU input dtype (f32 or bf16)
    x = x_ref[...].astype(cdt)                 # cast in-kernel (free VPU filler)

    h1 = jnp.dot(x, w1_ref[...], preferred_element_type=jnp.float32) + b1_ref[...]
    h1 = jnp.maximum(h1, 0.0).astype(cdt)
    h2 = jnp.dot(h1, w2_ref[...], preferred_element_type=jnp.float32) + b2_ref[...]
    h2 = jnp.maximum(h2, 0.0).astype(cdt)
    packed = jnp.dot(h2, w3p_ref[...], preferred_element_type=jnp.float32) + b3p_ref[...]

    out_ref[...] = packed + std2_ref[...] * eps2_ref[...]   # [mean | mean + std*eps]


def ppo_actor_forward(x, params, eps, upper_clamp=-1.0,
                      compute_dtype=jnp.float32,
                      max_block_b=4096,
                      num_batch_tiles=None,        # e.g. 2 on v7x (one tile per TC)
                      use_core_parallel=False,     # map batch axis to CORE_PARALLEL (v7x)
                      weight_buffer_count=None,    # e.g. 1 to single-buffer resident weights
                      return_packed=False):
    """PPO probabilistic actor forward. Returns (action_mean, action, action_logprob)
    (or (packed[B, 2A], logprob) when return_packed=True).

    compute_dtype=jnp.bfloat16 casts weights (wrapper) and activations (in-kernel)
    for the MXU with f32 accumulation; outputs are always float32.
    """
    B, S = x.shape
    W = params["w1"].shape[1]
    A = params["w3"].shape[1]
    cdt = jnp.dtype(compute_dtype)
    sub = 16 if cdt == jnp.dtype(jnp.bfloat16) else 8

    # ---- batch-independent head parameters (tiny, computed once) ----
    logstd_c = jnp.minimum(params["logstd"].reshape(1, -1).astype(jnp.float32),
                           float(upper_clamp))                     # (1, A)
    std = jnp.exp(logstd_c)                                         # (1, A)
    std2 = jnp.concatenate([std, std], axis=-1)                     # (1, 2A)

    # Packed last layer: third matmul emits [mean | mean] directly.
    w3p = jnp.concatenate([params["w3"], params["w3"]], axis=-1).astype(cdt)   # (W, 2A)
    b3p = jnp.concatenate([params["b3"].reshape(1, -1)] * 2, axis=-1).astype(jnp.float32)

    w1 = params["w1"].astype(cdt)
    w2 = params["w2"].astype(cdt)
    b1 = params["b1"].reshape(1, -1).astype(jnp.float32)
    b2 = params["b2"].reshape(1, -1).astype(jnp.float32)

    # eps pre-widened to (B, 2A): zeros in the first A lanes so the packed head
    # add is a single broadcasted FMA (no in-kernel concat / tile).
    eps_f32 = eps.astype(jnp.float32)
    eps2 = jnp.concatenate([jnp.zeros_like(eps_f32), eps_f32], axis=-1)         # (B, 2A)

    # ---- batch tile selection (single tile for typical batches) ----
    if num_batch_tiles is not None and num_batch_tiles > 1 and B > num_batch_tiles:
        TB = _round_up(pl.cdiv(B, num_batch_tiles), sub)   # equal tiles, sublane-aligned
        if TB >= B:
            TB = B
    elif B <= max_block_b:
        TB = B                                             # one grid step
    else:
        TB = max(sub, (max_block_b // sub) * sub)          # sublane-aligned large tile
    grid_b = pl.cdiv(B, TB)

    # ---- dimension semantics: CORE_PARALLEL only when explicitly requested ----
    if use_core_parallel and grid_b > 1 and hasattr(pltpu, "CORE_PARALLEL"):
        dim_sem = (pltpu.CORE_PARALLEL,)
    else:
        dim_sem = ("parallel",)

    # ---- specs ----
    def batch_spec(shape):                                 # tiled along batch
        return pl.BlockSpec(shape, lambda i: (i, 0))

    def resident_spec(shape):                              # constant block -> VMEM-resident
        if weight_buffer_count is None:
            return pl.BlockSpec(shape, lambda i: (0, 0))
        return pl.BlockSpec(shape, lambda i: (0, 0),
                            pipeline_mode=pl.Buffered(weight_buffer_count))

    # ---- advisory cost estimate for the XLA scheduler ----
    wbytes = (S * W + W * W + W * 2 * A) * cdt.itemsize
    flops = 2 * B * (S * W + W * W + W * 2 * A)
    bytes_accessed = int(B * S * x.dtype.itemsize          # x
                         + B * 2 * A * 4                   # eps2
                         + B * 2 * A * 4                   # packed output
                         + wbytes                           # weights
                         + (2 * W + 4 * A) * 4)             # biases + std2
    cost = pl.CostEstimate(flops=int(flops), transcendentals=0,
                           bytes_accessed=bytes_accessed)

    packed = pl.pallas_call(
        _ppo_actor_kernel,
        out_shape=jax.ShapeDtypeStruct((B, 2 * A), jnp.float32),
        grid=(grid_b,),
        in_specs=[
            batch_spec((TB, S)),         # x (native dtype; cast in-kernel)
            resident_spec((S, W)),       # w1
            resident_spec((1, W)),       # b1
            resident_spec((W, W)),       # w2
            resident_spec((1, W)),       # b2
            resident_spec((W, 2 * A)),   # w3 duplicated -> packed head matmul
            resident_spec((1, 2 * A)),   # b3 duplicated
            resident_spec((1, 2 * A)),   # std2 = [std | std]
            batch_spec((TB, 2 * A)),     # eps2 = [0 | eps]
        ],
        out_specs=batch_spec((TB, 2 * A)),                   # packed [mean | action]
        compiler_params=pltpu.CompilerParams(dimension_semantics=dim_sem),
        cost_estimate=cost,
    )(x, w1, b1, w2, b2, w3p, b3p, std2, eps2)

    # log_prob(mean + std*eps) = -0.5*eps^2 - logstd - 0.5*log(2*pi);
    # independent of the MLP output, so it lives in the wrapper (tiny XLA op,
    # reusing the already-clamped logstd).
    logprob = jnp.sum(-0.5 * eps_f32 * eps_f32 - logstd_c
                      - 0.5 * jnp.log(2.0 * jnp.pi), axis=-1)

    if return_packed:
        return packed, logprob
    return packed[:, :A], packed[:, A:], logprob


def init_params(key, dim_state, dim_act, width):
    """Deterministic synthetic parameter init (not a checkpoint load)."""
    k1, k2, k3 = jax.random.split(key, 3)
    scale1 = 1.0 / jnp.sqrt(dim_state)
    scale2 = 1.0 / jnp.sqrt(width)
    return {
        "w1": jax.random.normal(k1, (dim_state, width), jnp.float32) * scale1,
        "b1": jnp.zeros((1, width), jnp.float32),
        "w2": jax.random.normal(k2, (width, width), jnp.float32) * scale2,
        "b2": jnp.zeros((1, width), jnp.float32),
        "w3": jax.random.normal(k3, (width, dim_act), jnp.float32) * scale2,
        "b3": jnp.zeros((1, dim_act), jnp.float32),
        # nn.Parameter(torch.zeros(dim_act))
        "logstd": jnp.zeros((1, dim_act), jnp.float32),
    }


def reference_forward(x, params, eps, upper_clamp=-1.0):
    """Pure-JAX reference matching the PyTorch module's math."""
    h = jnp.maximum(x @ params["w1"] + params["b1"], 0.0)
    h = jnp.maximum(h @ params["w2"] + params["b2"], 0.0)
    mean = h @ params["w3"] + params["b3"]
    logstd = jnp.minimum(params["logstd"], upper_clamp)
    std = jnp.exp(logstd)
    y = mean + std * eps
    z = (y - mean) / std
    logp = -0.5 * z * z - logstd - 0.5 * jnp.log(2.0 * jnp.pi)
    return mean, y, jnp.sum(logp, axis=-1)


def _run_case(batch, dim_state, dim_act, width, upper_clamp, seed,
              compute_dtype, atol, rtol, **fwd_kwargs):
    root = jax.random.PRNGKey(seed)
    k_params, k_x, k_eps = jax.random.split(root, 3)
    params = init_params(k_params, dim_state, dim_act, width)
    x = jax.random.normal(k_x, (batch, dim_state), jnp.float32)
    # dist.sample() == mean + std * eps with eps ~ N(0,1); eps is sampled outside
    # the kernel so the result is deterministically comparable to the reference.
    eps = jax.random.normal(k_eps, (batch, dim_act), jnp.float32)

    mean, action, logprob = ppo_actor_forward(
        x, params, eps, upper_clamp, compute_dtype=compute_dtype, **fwd_kwargs)
    jax.block_until_ready((mean, action, logprob))

    ref_mean, ref_action, ref_logprob = reference_forward(x, params, eps, upper_clamp)
    assert jnp.allclose(mean, ref_mean, atol=atol, rtol=rtol)
    assert jnp.allclose(action, ref_action, atol=atol, rtol=rtol)
    assert jnp.allclose(logprob, ref_logprob, atol=max(atol, 1e-5), rtol=max(rtol, 1e-5))


if __name__ == "__main__":
    # 1) Small shapes consistent with the module's forward, f32, strict check.
    _run_case(batch=8, dim_state=16, dim_act=4, width=32, upper_clamp=-1.0,
              seed=0, compute_dtype=jnp.float32, atol=1e-5, rtol=1e-5)

    # 2) Same small shapes on the bf16 MXU path (weights bf16, in-kernel
    #    activation cast, f32 accumulation), loose check.
    _run_case(batch=8, dim_state=16, dim_act=4, width=32, upper_clamp=-1.0,
              seed=0, compute_dtype=jnp.bfloat16, atol=1e-1, rtol=1e-1)

    # 3) Module-default width=256, B=640: shape-aware tiling -> one grid step,
    #    weights VMEM-resident.
    _run_case(batch=640, dim_state=64, dim_act=8, width=256, upper_clamp=-1.0,
              seed=1, compute_dtype=jnp.float32, atol=1e-3, rtol=1e-3)

    # 4) Equal two-tile split (320+320, sublane-aligned) — the v7x layout; left on
    #    "parallel" semantics here so it runs on any generation. On v7x pass
    #    use_core_parallel=True to shard the two tiles across the TensorCores.
    _run_case(batch=640, dim_state=64, dim_act=8, width=256, upper_clamp=-1.0,
              seed=1, compute_dtype=jnp.float32, atol=1e-3, rtol=1e-3,
              num_batch_tiles=2)

    # 5) Large-batch path: explicit tiling with a partial trailing block.
    _run_case(batch=640, dim_state=64, dim_act=8, width=256, upper_clamp=-1.0,
              seed=2, compute_dtype=jnp.float32, atol=1e-3, rtol=1e-3,
              max_block_b=256)

    print("KERNEL_OK")
</pallas_src>

<mosaic_0001>
module attributes {stable_mosaic.version = 11 : i64} {
  func.func @_ppo_actor_kernel(%arg0: i32, %arg1: memref<8x16xf32, #tpu.memory_space<vmem>>, %arg2: memref<16x32xf32, #tpu.memory_space<vmem>>, %arg3: memref<1x32xf32, #tpu.memory_space<vmem>>, %arg4: memref<32x32xf32, #tpu.memory_space<vmem>>, %arg5: memref<1x32xf32, #tpu.memory_space<vmem>>, %arg6: memref<32x8xf32, #tpu.memory_space<vmem>>, %arg7: memref<1x8xf32, #tpu.memory_space<vmem>>, %arg8: memref<1x8xf32, #tpu.memory_space<vmem>>, %arg9: memref<8x8xf32, #tpu.memory_space<vmem>>, %arg10: memref<8x8xf32, #tpu.memory_space<vmem>>) attributes {dimension_semantics = [#tpu.dimension_semantics<parallel>], iteration_bounds = array<i64: 1>, scalar_prefetch = 0 : i64, scratch_operands = 0 : i64, tpu.core_type = #tpu.core_type<tc>, window_params = [{transform_indices = @transform_0, window_bounds = array<i64: 8, 16>}, {pipeline_mode = #tpu.pipeline_mode<synchronous>, transform_indices = @transform_1, window_bounds = array<i64: 16, 32>}, {pipeline_mode = #tpu.pipeline_mode<synchronous>, transform_indices = @transform_2, window_bounds = array<i64: 1, 32>}, {pipeline_mode = #tpu.pipeline_mode<synchronous>, transform_indices = @transform_3, window_bounds = array<i64: 32, 32>}, {pipeline_mode = #tpu.pipeline_mode<synchronous>, transform_indices = @transform_4, window_bounds = array<i64: 1, 32>}, {pipeline_mode = #tpu.pipeline_mode<synchronous>, transform_indices = @transform_5, window_bounds = array<i64: 32, 8>}, {pipeline_mode = #tpu.pipeline_mode<synchronous>, transform_indices = @transform_6, window_bounds = array<i64: 1, 8>}, {pipeline_mode = #tpu.pipeline_mode<synchronous>, transform_indices = @transform_7, window_bounds = array<i64: 1, 8>}, {transform_indices = @transform_8, window_bounds = array<i64: 8, 8>}, {transform_indices = @transform_9, window_bounds = array<i64: 8, 8>}]} {
    %c0 = arith.constant 0 : index
    %c0_0 = arith.constant 0 : index
    %0 = vector.load %arg1[%c0, %c0_0] : memref<8x16xf32, #tpu.memory_space<vmem>>, vector<8x16xf32>
    %c0_1 = arith.constant 0 : index
    %c0_2 = arith.constant 0 : index
    %1 = vector.load %arg2[%c0_1, %c0_2] : memref<16x32xf32, #tpu.memory_space<vmem>>, vector<16x32xf32>
    %cst = arith.constant dense<0.000000e+00> : vector<8x32xf32>
    %2 = tpu.matmul %0, %1, %cst {dimension_numbers = #tpu.dot_dimension_numbers<[1], [0], [0], [1], [0, 0, 1, 1], [], []>} : vector<8x16xf32>, vector<16x32xf32>, vector<8x32xf32> -> vector<8x32xf32>
    %c0_3 = arith.constant 0 : index
    %c0_4 = arith.constant 0 : index
    %3 = vector.load %arg3[%c0_3, %c0_4] : memref<1x32xf32, #tpu.memory_space<vmem>>, vector<1x32xf32>
    %4 = vector.broadcast %3 : vector<1x32xf32> to vector<8x32xf32>
    %5 = arith.addf %2, %4 : vector<8x32xf32>
    %cst_5 = arith.constant 0.000000e+00 : f32
    %6 = vector.broadcast %cst_5 : f32 to vector<8x32xf32>
    %7 = arith.maximumf %5, %6 : vector<8x32xf32>
    %c0_6 = arith.constant 0 : index
    %c0_7 = arith.constant 0 : index
    %8 = vector.load %arg4[%c0_6, %c0_7] : memref<32x32xf32, #tpu.memory_space<vmem>>, vector<32x32xf32>
    %cst_8 = arith.constant dense<0.000000e+00> : vector<8x32xf32>
    %9 = tpu.matmul %7, %8, %cst_8 {dimension_numbers = #tpu.dot_dimension_numbers<[1], [0], [0], [1], [0, 0, 1, 1], [], []>} : vector<8x32xf32>, vector<32x32xf32>, vector<8x32xf32> -> vector<8x32xf32>
    %c0_9 = arith.constant 0 : index
    %c0_10 = arith.constant 0 : index
    %10 = vector.load %arg5[%c0_9, %c0_10] : memref<1x32xf32, #tpu.memory_space<vmem>>, vector<1x32xf32>
    %11 = vector.broadcast %10 : vector<1x32xf32> to vector<8x32xf32>
    %12 = arith.addf %9, %11 : vector<8x32xf32>
    %cst_11 = arith.constant 0.000000e+00 : f32
    %13 = vector.broadcast %cst_11 : f32 to vector<8x32xf32>
    %14 = arith.maximumf %12, %13 : vector<8x32xf32>
    %c0_12 = arith.constant 0 : index
    %c0_13 = arith.constant 0 : index
    %15 = vector.load %arg6[%c0_12, %c0_13] : memref<32x8xf32, #tpu.memory_space<vmem>>, vector<32x8xf32>
    %cst_14 = arith.constant dense<0.000000e+00> : vector<8x8xf32>
    %16 = tpu.matmul %14, %15, %cst_14 {dimension_numbers = #tpu.dot_dimension_numbers<[1], [0], [0], [1], [0, 0, 1, 1], [], []>} : vector<8x32xf32>, vector<32x8xf32>, vector<8x8xf32> -> vector<8x8xf32>
    %c0_15 = arith.constant 0 : index
    %c0_16 = arith.constant 0 : index
    %17 = vector.load %arg7[%c0_15, %c0_16] : memref<1x8xf32, #tpu.memory_space<vmem>>, vector<1x8xf32>
    %18 = vector.broadcast %17 : vector<1x8xf32> to vector<8x8xf32>
    %19 = arith.addf %16, %18 : vector<8x8xf32>
    %c0_17 = arith.constant 0 : index
    %c0_18 = arith.constant 0 : index
    %20 = vector.load %arg8[%c0_17, %c0_18] : memref<1x8xf32, #tpu.memory_space<vmem>>, vector<1x8xf32>
    %c0_19 = arith.constant 0 : index
    %c0_20 = arith.constant 0 : index
    %21 = vector.load %arg9[%c0_19, %c0_20] : memref<8x8xf32, #tpu.memory_space<vmem>>, vector<8x8xf32>
    %22 = vector.broadcast %20 : vector<1x8xf32> to vector<8x8xf32>
    %23 = arith.mulf %22, %21 : vector<8x8xf32>
    %24 = arith.addf %19, %23 : vector<8x8xf32>
    %c0_21 = arith.constant 0 : index
    %c0_22 = arith.constant 0 : index
    %25 = vector.load %arg10[%c0_21, %c0_22] : memref<8x8xf32, #tpu.memory_space<vmem>>, vector<8x8xf32>
    tpu.vector_store %arg10[%c0_21, %c0_22], %24 {strides = array<i32>} : memref<8x8xf32, #tpu.memory_space<vmem>>, vector<8x8xf32>,
    return
  }
  func.func @transform_0(%arg0: i32) -> (i32, i32) {
    %c0_i32 = arith.constant 0 : i32
    %c0_i32_0 = arith.constant 0 : i32
    return %arg0, %c0_i32 : i32, i32
  }
  func.func @transform_1(%arg0: i32) -> (i32, i32) {
    %c0_i32 = arith.constant 0 : i32
    %c0_i32_0 = arith.constant 0 : i32
    %c0_i32_1 = arith.constant 0 : i32
    return %c0_i32, %c0_i32_0 : i32, i32
  }
  func.func @transform_2(%arg0: i32) -> (i32, i32) {
    %c0_i32 = arith.constant 0 : i32
    %c0_i32_0 = arith.constant 0 : i32
    %c0_i32_1 = arith.constant 0 : i32
    return %c0_i32, %c0_i32_0 : i32, i32
  }
  func.func @transform_3(%arg0: i32) -> (i32, i32) {
    %c0_i32 = arith.constant 0 : i32
    %c0_i32_0 = arith.constant 0 : i32
    %c0_i32_1 = arith.constant 0 : i32
    return %c0_i32, %c0_i32_0 : i32, i32
  }
  func.func @transform_4(%arg0: i32) -> (i32, i32) {
    %c0_i32 = arith.constant 0 : i32
    %c0_i32_0 = arith.constant 0 : i32
    %c0_i32_1 = arith.constant 0 : i32
    return %c0_i32, %c0_i32_0 : i32, i32
  }
  func.func @transform_5(%arg0: i32) -> (i32, i32) {
    %c0_i32 = arith.constant 0 : i32
    %c0_i32_0 = arith.constant 0 : i32
    %c0_i32_1 = arith.constant 0 : i32
    return %c0_i32, %c0_i32_0 : i32, i32
  }
  func.func @transform_6(%arg0: i32) -> (i32, i32) {
    %c0_i32 = arith.constant 0 : i32
    %c0_i32_0 = arith.constant 0 : i32
    %c0_i32_1 = arith.constant 0 : i32
    return %c0_i32, %c0_i32_0 : i32, i32
  }
  func.func @transform_7(%arg0: i32) -> (i32, i32) {
    %c0_i32 = arith.constant 0 : i32
    %c0_i32_0 = arith.constant 0 : i32
    %c0_i32_1 = arith.constant 0 : i32
    return %c0_i32, %c0_i32_0 : i32, i32
  }
  func.func @transform_8(%arg0: i32) -> (i32, i32) {
    %c0_i32 = arith.constant 0 : i32
    %c0_i32_0 = arith.constant 0 : i32
    return %arg0, %c0_i32 : i32, i32
  }
  func.func @transform_9(%arg0: i32) -> (i32, i32) {
    %c0_i32 = arith.constant 0 : i32
    %c0_i32_0 = arith.constant 0 : i32
    return %arg0, %c0_i32 : i32, i32
  }
}

</mosaic_0001>

<llo_original>
// kernel: tpu_custom_call.1
$region0: #{tpu_custom_call.1}
  #allocation0 [shape = 'u32[]', space=smem, size = 0x4, offset = 0x4, fixed_abs, tag = 'smem constant byte address 0x4 - core index']
  #allocation1 [shape = 'u32[72,128]{1,0:T(1,128)}', space=vmem, size = 0x9000, scoped, tag = 'internal scratch']
  %s0 = inlined_call_operand.vmem [shape: f32[8,16], index: 0, kind: input, shape index: {}]
  %s1 = inlined_call_operand.hbm [shape: f32[16,32], index: 1, kind: input, shape index: {}]
  %s2 = inlined_call_operand.vmem [shape: f32[1,32], index: 2, kind: input, shape index: {}]
  %s3 = inlined_call_operand.vmem [shape: f32[32,32], index: 3, kind: input, shape index: {}]
  %s4 = inlined_call_operand.vmem [shape: f32[1,32], index: 4, kind: input, shape index: {}]
  %s5 = inlined_call_operand.vmem [shape: f32[32,8], index: 5, kind: input, shape index: {}]
  %s6 = inlined_call_operand.vmem [shape: f32[1,8], index: 6, kind: input, shape index: {}]
  %s7 = inlined_call_operand.vmem [shape: f32[1,8], index: 7, kind: input, shape index: {}]
  %s8 = inlined_call_operand.hbm [shape: f32[8,8], index: 8, kind: input, shape index: {}]
  %s9 = inlined_call_operand.hbm [shape: f32[8,8], index: 9, kind: output, shape index: {}]
  %s10 = sld [smem:[#allocation0]]
  $region54: #{tpu_custom_call.1} parent=0
    _
  %s12 = ssub.s32 1, %s10
  %s13 = scalar_select 0, %s12, %s10
  $region1: #{tpu_custom_call.1} parent=0
    #allocation2 [shape = 'u8[8192]{0}', space=vmem, size = 0x2000, scoped, tag = 'input window, operand 1, single buffered']
    #allocation3 [shape = 's32[1]{0}', space=sflag, size = 0x4, scoped, tag = 'scoped memory for tpu_custom_call.1']
    #allocation4 [shape = 's32[1]{0}', space=sflag, size = 0x4, scoped, tag = 'scoped memory for tpu_custom_call.1']
    #allocation5 [shape = 'u8[4096]{0}', space=vmem, size = 0x1000, scoped, tag = 'input window, operand 8, single buffered']
    #allocation6 [shape = 's32[1]{0}', space=sflag, size = 0x4, scoped, tag = 'scoped memory for tpu_custom_call.1']
    #allocation7 [shape = 'u8[4096]{0}', space=vmem, size = 0x1000, scoped, tag = 'output window, operand 0, single buffered']
    %14 = vsyncpa [#allocation3], 0
    %15 = vsyncpa [#allocation6], 0
    %16 = vsyncpa [#allocation4], 0
    // Predicated region
    $region2: #{tpu_custom_call.1} parent=1 // pred_check
      _
    $region3: #{tpu_custom_call.1} parent=1 // pred_check_branch
      %18 = sbr.rel (0) target = $region5
    $region4: #{tpu_custom_call.1} parent=1 // pred_region
      _
    $region5: #{tpu_custom_call.1} parent=1 // pred_fallthru
      _
    // Predicated region
    $region6: #{tpu_custom_call.1} parent=1 // pred_check
      _
    $region7: #{tpu_custom_call.1} parent=1 // pred_check_branch
      %20 = sbr.rel (0) target = $region9
    $region8: #{tpu_custom_call.1} parent=1 // pred_region
      %22 = vsyncadd [#allocation3], 0
      %s23 = sshll.u32 %s1, 4
      %s24 = int_to_ptr.hbm [resolvable:$true] %s23
      %s25 = sshll.u32 [#allocation2], 4
      %s26 = int_to_ptr.vmem [resolvable:$true] %s25
      %31 = dma.hbm_to_vmem [thread:$0]  %s24, 256, %s26, [#allocation3], 128, 128, 8
    $region9: #{tpu_custom_call.1} parent=1 // pred_fallthru
      _
    // Predicated region
    $region10: #{tpu_custom_call.1} parent=1 // pred_check
      _
    $region11: #{tpu_custom_call.1} parent=1 // pred_check_branch
      %33 = sbr.rel (0) target = $region13
    $region12: #{tpu_custom_call.1} parent=1 // pred_region
      _
    $region13: #{tpu_custom_call.1} parent=1 // pred_fallthru
      _
    // Predicated region
    $region14: #{tpu_custom_call.1} parent=1 // pred_check
      _
    $region15: #{tpu_custom_call.1} parent=1 // pred_check_branch
      %35 = sbr.rel (0) target = $region17
    $region16: #{tpu_custom_call.1} parent=1 // pred_region
      _
    $region17: #{tpu_custom_call.1} parent=1 // pred_fallthru
      _
    // Predicated region
    $region18: #{tpu_custom_call.1} parent=1 // pred_check
      _
    $region19: #{tpu_custom_call.1} parent=1 // pred_check_branch
      %37 = sbr.rel (0) target = $region21
    $region20: #{tpu_custom_call.1} parent=1 // pred_region
      _
    $region21: #{tpu_custom_call.1} parent=1 // pred_fallthru
      _
    // Predicated region
    $region22: #{tpu_custom_call.1} parent=1 // pred_check
      _
    $region23: #{tpu_custom_call.1} parent=1 // pred_check_branch
      %39 = sbr.rel (0) target = $region25
    $region24: #{tpu_custom_call.1} parent=1 // pred_region
      _
    $region25: #{tpu_custom_call.1} parent=1 // pred_fallthru
      _
    // Predicated region
    $region26: #{tpu_custom_call.1} parent=1 // pred_check
      _
    $region27: #{tpu_custom_call.1} parent=1 // pred_check_branch
      %41 = sbr.rel (0) target = $region29
    $region28: #{tpu_custom_call.1} parent=1 // pred_region
      _
    $region29: #{tpu_custom_call.1} parent=1 // pred_fallthru
      _
    // Predicated region
    $region30: #{tpu_custom_call.1} parent=1 // pred_check
      _
    $region31: #{tpu_custom_call.1} parent=1 // pred_check_branch
      %43 = sbr.rel (0) target = $region33
    $region32: #{tpu_custom_call.1} parent=1 // pred_region
      _
    $region33: #{tpu_custom_call.1} parent=1 // pred_fallthru
      _
    // Predicated region
    $region34: #{tpu_custom_call.1} parent=1 // pred_check
      _
    $region35: #{tpu_custom_call.1} parent=1 // pred_check_branch
      %45 = sbr.rel (0) target = $region37
    $region36: #{tpu_custom_call.1} parent=1 // pred_region
      %47 = vsyncadd [#allocation6], 0
      %s49 = sshll.u32 %s8, 4
      %s50 = int_to_ptr.hbm [resolvable:$true] %s49
      %s51 = sshll.u32 [#allocation5], 4
      %s52 = int_to_ptr.vmem [resolvable:$true] %s51
      %54 = dma.hbm_to_vmem [thread:$0]  %s50, 128, %s52, [#allocation6]
    $region37: #{tpu_custom_call.1} parent=1 // pred_fallthru
      _
    // Predicated region
    $region38: #{tpu_custom_call.1} parent=1 // pred_check
      _
    $region39: #{tpu_custom_call.1} parent=1 // pred_check_branch
      %56 = sbr.rel (0) target = $region41
    $region40: #{tpu_custom_call.1} parent=1 // pred_region
      %58 = dma.done [#allocation3], 256
    $region41: #{tpu_custom_call.1} parent=1 // pred_fallthru
      _
    // Predicated region
    $region42: #{tpu_custom_call.1} parent=1 // pred_check
      _
    $region43: #{tpu_custom_call.1} parent=1 // pred_check_branch
      %60 = sbr.rel (0) target = $region45
    $region44: #{tpu_custom_call.1} parent=1 // pred_region
      %62 = dma.done [#allocation6], 128
    $region45: #{tpu_custom_call.1} parent=1 // pred_fallthru
      _
    %v63 = vld [vmem:[%s0] sm:$0xff]
    %v64 = vld [vmem:[#allocation2] sm:$0xff]
    %v65 = vld [vmem:[#allocation2 + $0x8] sm:$0xff]
    %v66 = vld [vmem:[%s2] sm:$0x1]
    %v68 = vperm.slane %v66, 0
    %vm70 = vcmask 130048
    %v72 = vsel %vm70, %v63, 0
    %74 = vmatpush.msra.mxu0 0.0
    %75 = vmatpush.msra.mxu0 0.0
    %76 = vmatpush.msra.mxu0 0.0
    %77 = vmatpush.msra.mxu0 0.0
    %78 = vmatpush.msra.mxu0 0.0
    %79 = vmatpush.msra.mxu0 0.0
    %80 = vmatpush.msra.mxu0 0.0
    %81 = vmatpush.msra.mxu0 0.0
    %82 = vmatpush.msra.mxu0 0.0
    %83 = vmatpush.msra.mxu0 0.0
    %84 = vmatpush.msra.mxu0 0.0
    %85 = vmatpush.msra.mxu0 0.0
    %86 = vmatpush.msra.mxu0 0.0
    %87 = vmatpush.msra.mxu0 0.0
    %88 = vmatpush.msra.mxu0 %v65
    %89 = vmatpush.msra.mxu0 %v64
    %90 = vmatmul.f32.gmra.mxu0 %v72
    %v91 = vpop.f32.mrf.mxu0
    %v92 = vadd.f32 %v68, %v91
    %93 = vdwg.mxu0
    %v94 = vmax.f32 %v92, 0.0
    %v95 = vld [vmem:[%s3] sm:$0xff]
    %v96 = vld [vmem:[%s3 + $0x8] sm:$0xff]
    %v97 = vld [vmem:[%s3 + $0x10] sm:$0xff]
    %v98 = vld [vmem:[%s3 + $0x18] sm:$0xff]
    %v99 = vld [vmem:[%s4] sm:$0x1]
    %v101 = vperm.slane %v99, 0
    %vm103 = vcmask 261120
    %v105 = vsel %vm103, %v94, 0
    %107 = vmatpush.msra.mxu0 0.0
    %108 = vmatpush.msra.mxu0 0.0
    %109 = vmatpush.msra.mxu0 0.0
    %110 = vmatpush.msra.mxu0 0.0
    %111 = vmatpush.msra.mxu0 0.0
    %112 = vmatpush.msra.mxu0 0.0
    %113 = vmatpush.msra.mxu0 0.0
    %114 = vmatpush.msra.mxu0 0.0
    %115 = vmatpush.msra.mxu0 0.0
    %116 = vmatpush.msra.mxu0 0.0
    %117 = vmatpush.msra.mxu0 0.0
    %118 = vmatpush.msra.mxu0 0.0
    %119 = vmatpush.msra.mxu0 %v98
    %120 = vmatpush.msra.mxu0 %v97
    %121 = vmatpush.msra.mxu0 %v96
    %122 = vmatpush.msra.mxu0 %v95
    %123 = vmatmul.f32.gmra.mxu0 %v105
    %v124 = vpop.f32.mrf.mxu0
    %v125 = vadd.f32 %v101, %v124
    %126 = vdwg.mxu0
    %v127 = vmax.f32 %v125, 0.0
    %v128 = vld [vmem:[%s5] sm:$0xff]
    %v129 = vld [vmem:[%s5 + $0x8] sm:$0xff]
    %v130 = vld [vmem:[%s5 + $0x10] sm:$0xff]
    %v131 = vld [vmem:[%s5 + $0x18] sm:$0xff]
    %v132 = vld [vmem:[%s6] sm:$0x1]
    %v134 = vperm.slane %v132, 0
    %v137 = vsel %vm103, %v127, 0
    %139 = vmatpush.msra.mxu0 0.0
    %140 = vmatpush.msra.mxu0 0.0
    %141 = vmatpush.msra.mxu0 0.0
    %142 = vmatpush.msra.mxu0 0.0
    %143 = vmatpush.msra.mxu0 0.0
    %144 = vmatpush.msra.mxu0 0.0
    %145 = vmatpush.msra.mxu0 0.0
    %146 = vmatpush.msra.mxu0 0.0
    %147 = vmatpush.msra.mxu0 0.0
    %148 = vmatpush.msra.mxu0 0.0
    %149 = vmatpush.msra.mxu0 0.0
    %150 = vmatpush.msra.mxu0 0.0
    %151 = vmatpush.msra.mxu0 %v131
    %152 = vmatpush.msra.mxu0 %v130
    %153 = vmatpush.msra.mxu0 %v129
    %154 = vmatpush.msra.mxu0 %v128
    %155 = vmatmul.f32.gmra.mxu0 %v137
    %v156 = vpop.f32.mrf.mxu0
    %v157 = vadd.f32 %v134, %v156
    %158 = vdwg.mxu0
    %v159 = vld [vmem:[%s7] sm:$0x1]
    %v160 = vld [vmem:[#allocation5] sm:$0xff]
    %v162 = vperm.slane %v159, 0
    %v164 = vmul.f32 %v162, %v160
    %v165 = vadd.f32 %v157, %v164
    %vm166 = vcmask 64512
    %167 = vst.msk [vmem:[#allocation7] sm:$0xff] %vm166, %v165
    // Predicated region
    $region46: #{tpu_custom_call.1} parent=1 // pred_check
      _
    $region47: #{tpu_custom_call.1} parent=1 // pred_check_branch
      %169 = sbr.rel (0) target = $region49
    $region48: #{tpu_custom_call.1} parent=1 // pred_region
      %171 = vsyncadd [#allocation4], 0
      %s173 = sshll.u32 [#allocation7], 4
      %s174 = int_to_ptr.vmem [resolvable:$true] %s173
      %s175 = sshll.u32 %s9, 4
      %s176 = int_to_ptr.hbm [resolvable:$true] %s175
      %178 = dma.vmem_to_hbm [thread:$0]  %s174, 128, %s176, [#allocation4]
    $region49: #{tpu_custom_call.1} parent=1 // pred_fallthru
      _
    // Predicated region
    $region50: #{tpu_custom_call.1} parent=1 // pred_check
      _
    $region51: #{tpu_custom_call.1} parent=1 // pred_check_branch
      %180 = sbr.rel (0) target = $region53
    $region52: #{tpu_custom_call.1} parent=1 // pred_region
      %182 = dma.done [#allocation4], 128
    $region53: #{tpu_custom_call.1} parent=1 // pred_fallthru
      _
    %183 = vsyncpa [#allocation3], 1
    %184 = vsyncpa [#allocation6], 1
    %185 = vsyncpa [#allocation4], 1

</llo_original>
